<compile_context>
chip_gen: v7x
topology: tpu7x:2x2x1
jax: 0.10.0
libtpu: 0.0.40
codegen_flags: <defaults>
</compile_context>

<pallas_src>
import jax
import jax.numpy as jnp
from jax.experimental import pallas as pl
from jax.experimental.pallas import tpu as pltpu


def _round_up(a, m):
    return (a + m - 1) // m * m


def _vmem_capacity_bytes():
    """Physical VMEM per TensorCore; conservative fallback = v7x (64 MiB)."""
    try:
        info = pltpu.get_tpu_info()
        for attr in ("vmem_capacity_bytes", "vmem_bytes", "vmem_size_bytes"):
            v = getattr(info, attr, None)
            if v:
                return int(v)
    except Exception:
        pass
    return 64 << 20


def regressor_kernel(x_ref, w_ref, b_ref, o_ref):
    # Max-pool over the sequence axis in the streamed dtype (max is exact in
    # the input dtype); widen only the small (TB, D) pooled result.
    pooled = jnp.max(x_ref[...], axis=1).astype(jnp.float32)          # (TB, D)
    out = jnp.dot(pooled, w_ref[...], preferred_element_type=jnp.float32)
    o_ref[...] = (out + b_ref[...]).astype(o_ref.dtype)               # (TB, 1)


def regressor_forward(x, w1, b1, w2, b2, w3, b3, *, block_b=None):
    """x: (B, S, D); weights stored as (in, out); biases as (1, out)."""
    B, S, D = x.shape

    # --- collapse the activation-free Linear chain to one (D, 1) affine map ---
    f32 = jnp.float32
    w_eff = w1.astype(f32) @ w2.astype(f32) @ w3.astype(f32)          # (D, 1)
    b_eff = (b1.astype(f32) @ w2.astype(f32) @ w3.astype(f32)
             + b2.astype(f32) @ w3.astype(f32)
             + b3.astype(f32))                                        # (1, 1)

    # --- tile sizing from the true lane-padded VMEM footprint ------------------
    itemsize = jnp.dtype(x.dtype).itemsize
    s_pad = _round_up(S, 8)
    d_pad = _round_up(D, 128)
    bytes_per_row = s_pad * d_pad * itemsize            # lane-padded x bytes / batch row

    vmem_cap = _vmem_capacity_bytes()
    vmem_limit = max(16 << 20, (vmem_cap * 3) // 4)      # explicit scoped-VMEM limit
    # Double-buffered x tile: aim for 4-16 MiB per pipeline buffer, under the limit.
    per_buffer = min(16 << 20, (vmem_limit - (2 << 20)) // 2)
    per_buffer = max(per_buffer, 4 << 20)

    if block_b is None:
        max_tb = max(8, (per_buffer // bytes_per_row) // 8 * 8)
        block_b = B if B <= max_tb else max_tb           # ==B (full) or multiple of 8

    grid = (pl.cdiv(B, block_b),)                        # no padding copy of x

    flops = 2 * B * D + B * S * D                        # matmul + pooling compares
    bytes_accessed = B * S * D * itemsize + (D + 1) * 4 + B * 4

    out = pl.pallas_call(
        regressor_kernel,
        out_shape=jax.ShapeDtypeStruct((B, 1), jnp.float32),
        grid_spec=pltpu.PrefetchScalarGridSpec(
            num_scalar_prefetch=0,
            grid=grid,
            in_specs=[
                # x: tiled along batch -> double-buffered, pipelined DMA.
                pl.BlockSpec((block_b, S, D), lambda i: (i, 0, 0)),
                # collapsed weight/bias: constant block index -> VMEM-resident.
                pl.BlockSpec((D, 1), lambda i: (0, 0)),
                pl.BlockSpec((1, 1), lambda i: (0, 0)),
            ],
            out_specs=pl.BlockSpec((block_b, 1), lambda i: (i, 0)),
        ),
        compiler_params=pltpu.CompilerParams(
            dimension_semantics=("parallel",),           # batch tiles are independent
            vmem_limit_bytes=int(vmem_limit),
        ),
        cost_estimate=pl.CostEstimate(
            flops=flops, transcendentals=0, bytes_accessed=bytes_accessed),
    )(x, w_eff, b_eff)

    return out


def init_params(key, input_dim, hidn_dim):
    """Deterministic synthetic parameters matching the module's shapes."""
    ks = jax.random.split(key, 6)
    # stored as (in, out); biases as (1, out) so they are 2-D in VMEM
    w1 = jax.random.normal(ks[0], (input_dim, hidn_dim), jnp.float32) * 0.1
    b1 = jax.random.normal(ks[1], (1, hidn_dim), jnp.float32) * 0.1
    w2 = jax.random.normal(ks[2], (hidn_dim, 16), jnp.float32) * 0.1
    b2 = jax.random.normal(ks[3], (1, 16), jnp.float32) * 0.1
    w3 = jax.random.normal(ks[4], (16, 1), jnp.float32) * 0.1
    b3 = jax.random.normal(ks[5], (1, 1), jnp.float32) * 0.1
    return w1, b1, w2, b2, w3, b3


def regressor_reference(x, w1, b1, w2, b2, w3, b3):
    """Pure-JAX reference (mirrors the torch module layer-by-layer, eval mode)."""
    pooled = jnp.max(x, axis=1)
    h = pooled @ w1 + b1
    h = h @ w2 + b2
    return h @ w3 + b3


if __name__ == "__main__":
    B, S, D, H = 2, 8, 32, 32   # batch, seq_len, input_dim (hidn_size), hidn_dim

    key = jax.random.PRNGKey(0)
    kx, kp = jax.random.split(key)
    x = jax.random.normal(kx, (B, S, D), jnp.float32)
    params = init_params(kp, D, H)

    out = regressor_forward(x, *params)
    out = jax.block_until_ready(out)

    ref = regressor_reference(x, *params)
    assert out.shape == (B, 1), out.shape
    assert jnp.allclose(out, ref, atol=1e-4, rtol=1e-4), (out, ref)

    print("KERNEL_OK")
</pallas_src>

<mosaic_0001>
module attributes {stable_mosaic.version = 11 : i64} {
  func.func @regressor_kernel(%arg0: i32, %arg1: memref<2x8x32xf32, #tpu.memory_space<vmem>>, %arg2: memref<32x1xf32, #tpu.memory_space<vmem>>, %arg3: memref<1x1xf32, #tpu.memory_space<vmem>>, %arg4: memref<2x1xf32, #tpu.memory_space<vmem>>) attributes {dimension_semantics = [#tpu.dimension_semantics<parallel>], iteration_bounds = array<i64: 1>, scalar_prefetch = 0 : i64, scratch_operands = 0 : i64, tpu.core_type = #tpu.core_type<tc>, window_params = [{transform_indices = @transform_0, window_bounds = array<i64: 2, 8, 32>}, {pipeline_mode = #tpu.pipeline_mode<synchronous>, transform_indices = @transform_1, window_bounds = array<i64: 32, 1>}, {pipeline_mode = #tpu.pipeline_mode<synchronous>, transform_indices = @transform_2, window_bounds = array<i64: 1, 1>}, {transform_indices = @transform_3, window_bounds = array<i64: 2, 1>}]} {
    %c0 = arith.constant 0 : index
    %c0_0 = arith.constant 0 : index
    %c0_1 = arith.constant 0 : index
    %0 = vector.load %arg1[%c0, %c0_0, %c0_1] : memref<2x8x32xf32, #tpu.memory_space<vmem>>, vector<2x8x32xf32>
    %cst = arith.constant dense<0xFF800000> : vector<2x32xf32>
    %1 = vector.multi_reduction <maximumf>, %0, %cst [1] : vector<2x8x32xf32> to vector<2x32xf32>
    %c0_2 = arith.constant 0 : index
    %c0_3 = arith.constant 0 : index
    %2 = vector.load %arg2[%c0_2, %c0_3] : memref<32x1xf32, #tpu.memory_space<vmem>>, vector<32x1xf32>
    %cst_4 = arith.constant dense<0.000000e+00> : vector<2x1xf32>
    %3 = tpu.matmul %1, %2, %cst_4 {dimension_numbers = #tpu.dot_dimension_numbers<[1], [0], [0], [1], [0, 0, 1, 1], [], []>} : vector<2x32xf32>, vector<32x1xf32>, vector<2x1xf32> -> vector<2x1xf32>
    %c0_5 = arith.constant 0 : index
    %c0_6 = arith.constant 0 : index
    %4 = vector.load %arg3[%c0_5, %c0_6] : memref<1x1xf32, #tpu.memory_space<vmem>>, vector<1x1xf32>
    %5 = vector.broadcast %4 : vector<1x1xf32> to vector<2x1xf32>
    %6 = arith.addf %3, %5 : vector<2x1xf32>
    %c0_7 = arith.constant 0 : index
    %c0_8 = arith.constant 0 : index
    %7 = vector.load %arg4[%c0_7, %c0_8] : memref<2x1xf32, #tpu.memory_space<vmem>>, vector<2x1xf32>
    tpu.vector_store %arg4[%c0_7, %c0_8], %6 {strides = array<i32>} : memref<2x1xf32, #tpu.memory_space<vmem>>, vector<2x1xf32>,
    return
  }
  func.func @transform_0(%arg0: i32) -> (i32, i32, i32) {
    %c0_i32 = arith.constant 0 : i32
    %c0_i32_0 = arith.constant 0 : i32
    %c0_i32_1 = arith.constant 0 : i32
    return %arg0, %c0_i32, %c0_i32_0 : i32, i32, i32
  }
  func.func @transform_1(%arg0: i32) -> (i32, i32) {
    %c0_i32 = arith.constant 0 : i32
    %c0_i32_0 = arith.constant 0 : i32
    %c0_i32_1 = arith.constant 0 : i32
    return %c0_i32, %c0_i32_0 : i32, i32
  }
  func.func @transform_2(%arg0: i32) -> (i32, i32) {
    %c0_i32 = arith.constant 0 : i32
    %c0_i32_0 = arith.constant 0 : i32
    %c0_i32_1 = arith.constant 0 : i32
    return %c0_i32, %c0_i32_0 : i32, i32
  }
  func.func @transform_3(%arg0: i32) -> (i32, i32) {
    %c0_i32 = arith.constant 0 : i32
    %c0_i32_0 = arith.constant 0 : i32
    return %arg0, %c0_i32 : i32, i32
  }
}

</mosaic_0001>

<llo_original>
// kernel: tpu_custom_call.1
$region0: #{tpu_custom_call.1}
  #allocation0 [shape = 'u32[]', space=smem, size = 0x4, offset = 0x4, fixed_abs, tag = 'smem constant byte address 0x4 - core index']
  #allocation1 [shape = 'u32[144,128]{1,0:T(1,128)}', space=vmem, size = 0x12000, scoped, tag = 'internal scratch']
  #allocation2 [shape = 'f32[1,1]{1,0:T(1,128)S(1)}', space=vmem, size = 0x200, scoped, tag = 'scoped memory for tpu_custom_call.1']
  %s0 = inlined_call_operand.vmem [shape: f32[2,8,32], index: 0, kind: input, shape index: {}]
  %s1 = inlined_call_operand.vmem [shape: f32[32,1], index: 1, kind: input, shape index: {}]
  %s2 = inlined_call_operand.<no memory space> [shape: f32[1,1], index: 2, kind: input, shape index: {}]
  %s3 = inlined_call_operand.vmem [shape: f32[2,1], index: 3, kind: output, shape index: {}]
  %s4 = sld [smem:[#allocation0]]
  $region22: #{tpu_custom_call.1} parent=0
    _
  %s6 = ssub.s32 1, %s4
  %s7 = scalar_select 0, %s6, %s4
  %v8 = vstv %s2
  %9 = vst [vmem:[#allocation2] sm:$0x1] %v8
  // Predicated region
  $region2: #{tpu_custom_call.1} parent=0 // pred_check
    _
  $region3: #{tpu_custom_call.1} parent=0 // pred_check_branch
    %11 = sbr.rel (0) target = $region5
  $region4: #{tpu_custom_call.1} parent=0 // pred_region
    _
  $region5: #{tpu_custom_call.1} parent=0 // pred_fallthru
    _
  // Predicated region
  $region6: #{tpu_custom_call.1} parent=0 // pred_check
    _
  $region7: #{tpu_custom_call.1} parent=0 // pred_check_branch
    %13 = sbr.rel (0) target = $region9
  $region8: #{tpu_custom_call.1} parent=0 // pred_region
    _
  $region9: #{tpu_custom_call.1} parent=0 // pred_fallthru
    _
  // Predicated region
  $region10: #{tpu_custom_call.1} parent=0 // pred_check
    _
  $region11: #{tpu_custom_call.1} parent=0 // pred_check_branch
    %15 = sbr.rel (0) target = $region13
  $region12: #{tpu_custom_call.1} parent=0 // pred_region
    _
  $region13: #{tpu_custom_call.1} parent=0 // pred_fallthru
    _
  %v16 = vld [vmem:[%s0] sm:$0xff]
  %v17 = vld [vmem:[%s0 + $0x8] sm:$0xff]
  %vm18 = vcmask 261120
  %v19 = vsel %vm18, %v16, -inf
  %v20 = vrot.slane %v19, 4
  %v21 = vmax.f32 %v19, %v20
  %v22 = vrot.slane %v21, 2
  %v23 = vmax.f32 %v21, %v22
  %v24 = vrot.slane %v23, 1
  %v25 = vmax.f32 %v23, %v24
  %v26 = vsel %vm18, %v17, -inf
  %v27 = vrot.slane %v26, 4
  %v28 = vmax.f32 %v26, %v27
  %v29 = vrot.slane %v28, 2
  %v30 = vmax.f32 %v28, %v29
  %v31 = vrot.slane %v30, 1
  %v32 = vmax.f32 %v30, %v31
  %v33 = vld [vmem:[%s1] sm:$0xff]
  %v34 = vld [vmem:[%s1 + $0x8] sm:$0xff]
  %v35 = vld [vmem:[%s1 + $0x10] sm:$0xff]
  %v36 = vld [vmem:[%s1 + $0x18] sm:$0xff]
  %v37 = vld [vmem:[#allocation2] sm:$0x1]
  %v39 = vlaneseq
  %v40 = vshrl.u32 %v39, 7
  %v41 = vsub.s32 0, %v40
  %v42 = vrot.slane %v37, %v41
  %vm46 = vcmask 1041409
  %v47 = vsel %vm46, %v32, %v25
  %v48 = vsel %vm18, %v47, 0
  %50 = vmatprep.subr.mxu0 0.0
  %51 = vmatpush1.msra.mxu0 %v33
  %52 = vmatprep.subr.mxu0 0.0
  %53 = vmatpush1.msra.mxu0 %v34
  %54 = vmatprep.subr.mxu0 0.0
  %55 = vmatpush1.msra.mxu0 %v35
  %56 = vmatprep.subr.mxu0 0.0
  %57 = vmatpush1.msra.mxu0 %v36
  %58 = vmatprep.subr.mxu0 0.0
  %59 = vmatpush1.msra.mxu0 0.0
  %60 = vmatprep.subr.mxu0 0.0
  %61 = vmatpush1.msra.mxu0 0.0
  %62 = vmatprep.subr.mxu0 0.0
  %63 = vmatpush1.msra.mxu0 0.0
  %64 = vmatprep.subr.mxu0 0.0
  %65 = vmatpush1.msra.mxu0 0.0
  %66 = vmatprep.subr.mxu0 0.0
  %67 = vmatpush1.msra.mxu0 0.0
  %68 = vmatprep.subr.mxu0 0.0
  %69 = vmatpush1.msra.mxu0 0.0
  %70 = vmatprep.subr.mxu0 0.0
  %71 = vmatpush1.msra.mxu0 0.0
  %72 = vmatprep.subr.mxu0 0.0
  %73 = vmatpush1.msra.mxu0 0.0
  %74 = vmatprep.subr.mxu0 0.0
  %75 = vmatpush1.msra.mxu0 0.0
  %76 = vmatprep.subr.mxu0 0.0
  %77 = vmatpush1.msra.mxu0 0.0
  %78 = vmatprep.subr.mxu0 0.0
  %79 = vmatpush1.msra.mxu0 0.0
  %80 = vmatprep.subr.mxu0 0.0
  %81 = vmatpush1.msra.mxu0 0.0
  %82 = vmatprep.subr.mxu0 0.0
  %83 = vmatpush1.msra.mxu0 0.0
  %84 = vmatprep.subr.mxu0 0.0
  %85 = vmatpush1.msra.mxu0 0.0
  %86 = vmatprep.subr.mxu0 0.0
  %87 = vmatpush1.msra.mxu0 0.0
  %88 = vmatprep.subr.mxu0 0.0
  %89 = vmatpush1.msra.mxu0 0.0
  %90 = vmatprep.subr.mxu0 0.0
  %91 = vmatpush1.msra.mxu0 0.0
  %92 = vmatprep.subr.mxu0 0.0
  %93 = vmatpush1.msra.mxu0 0.0
  %94 = vmatprep.subr.mxu0 0.0
  %95 = vmatpush1.msra.mxu0 0.0
  %96 = vmatprep.subr.mxu0 0.0
  %97 = vmatpush1.msra.mxu0 0.0
  %98 = vmatprep.subr.mxu0 0.0
  %99 = vmatpush1.msra.mxu0 0.0
  %100 = vmatprep.subr.mxu0 0.0
  %101 = vmatpush1.msra.mxu0 0.0
  %102 = vmatprep.subr.mxu0 0.0
  %103 = vmatpush1.msra.mxu0 0.0
  %104 = vmatprep.subr.mxu0 0.0
  %105 = vmatpush1.msra.mxu0 0.0
  %106 = vmatprep.subr.mxu0 0.0
  %107 = vmatpush1.msra.mxu0 0.0
  %108 = vmatprep.subr.mxu0 0.0
  %109 = vmatpush1.msra.mxu0 0.0
  %110 = vmatprep.subr.mxu0 0.0
  %111 = vmatpush1.msra.mxu0 0.0
  %112 = vmatprep.subr.mxu0 0.0
  %113 = vmatpush1.msra.mxu0 0.0
  %114 = vmatprep.mubr.f32.mxu0 0.0
  %115 = vmatmul.mubr.f32.gmra.mrb[0].mxu0 %v48
  %v116 = vpop.f32.mrb[0].mxu0
  %v117 = vadd.f32 %v42, %v116
  %v118 = vpop.f32.mrb[0].mxu0
  %119 = vdwg.mxu0
  %vm120 = vcmask 1024
  %121 = vst.msk [vmem:[%s3] sm:$0x3] %vm120, %v117
  // Predicated region
  $region14: #{tpu_custom_call.1} parent=0 // pred_check
    _
  $region15: #{tpu_custom_call.1} parent=0 // pred_check_branch
    %123 = sbr.rel (0) target = $region17
  $region16: #{tpu_custom_call.1} parent=0 // pred_region
    _
  $region17: #{tpu_custom_call.1} parent=0 // pred_fallthru
    _
  // Predicated region
  $region18: #{tpu_custom_call.1} parent=0 // pred_check
    _
  $region19: #{tpu_custom_call.1} parent=0 // pred_check_branch
    %125 = sbr.rel (0) target = $region21
  $region20: #{tpu_custom_call.1} parent=0 // pred_region
    _
  $region21: #{tpu_custom_call.1} parent=0 // pred_fallthru
    _

</llo_original>
